<compile_context>
chip_gen: v6e
topology: v6e:2x2x1
jax: 0.10.0
libtpu: 0.0.40
codegen_flags: <defaults>
</compile_context>

<pallas_src>
import jax
import jax.numpy as jnp
from jax.experimental import pallas as pl
from jax.experimental.pallas import tpu as pltpu


def mine_kernel(xy_ref, w1_ref, b1_ref, w2_ref, b2_ref, out_ref):
    # xy_ref : (Dp, 2*TN)  lane-concatenated [x^T | y^T] batch tile
    # w1_ref : (Hp, Dp)    fc1 weight (PyTorch (out, in) layout, padded)
    # b1_ref : (Hp, 1)     fc1 bias (column)
    # w2_ref : (Hp, 1)     fc2 weight (column)
    # b2_ref : (1, 1)      fc2 bias
    # out_ref: (1, TN)     lane-dense mi tile
    tn = out_ref.shape[-1]

    # Fused layer 1: one (Hp, Dp) @ (Dp, 2*TN) MXU dot covers both x and y halves.
    pre = jnp.dot(w1_ref[...], xy_ref[...], preferred_element_type=jnp.float32)
    act = jnp.maximum(pre + b1_ref[...], 0.0)                      # (Hp, 2*TN) f32

    # h = relu(fc1(x)) + relu(fc1(y)); the reference's extra relu(h) is redundant
    # because both summands are already >= 0.  Slice boundary is lane-tile aligned.
    hsum = act[:, :tn] + act[:, tn:]                               # (Hp, TN)

    # fc2 (Hp -> 1) as VPU multiply + sublane (XLU) reduce: keeps the MXU free and
    # the result lands directly in the lane-dense (1, TN) layout.
    mi = jnp.sum(hsum * w2_ref[...], axis=0, keepdims=True) + b2_ref[...]
    out_ref[...] = mi.astype(out_ref.dtype)


def mine_forward(x, y, w1, b1, w2, b2, *, tn=None, input_dtype=jnp.float32):
    """x, y: (N, D).  PyTorch-layout params: w1 (H, D), b1 (H,), w2 (1, H), b2 (1,).

    Returns mi with shape (N, 1), matching the PyTorch module.
    Set input_dtype=jnp.bfloat16 on v6e/v7x to halve streamed HBM bytes.
    """
    n, d = x.shape
    hdim = w1.shape[0]

    dp = max(8, ((d + 7) // 8) * 8)          # pad features to a sublane multiple
    hp = ((hdim + 7) // 8) * 8               # pad hidden units to a sublane multiple
    npad = ((n + 127) // 128) * 128          # pad batch to full lane tiles

    # Adaptive batch-tile size: small problems run in a single grid step; large
    # batches tile at 512/256/128 lanes for a bounded, pipelined VMEM footprint.
    if tn is None:
        if npad <= 1024:
            tn = npad
        elif npad % 512 == 0:
            tn = 512
        elif npad % 256 == 0:
            tn = 256
        else:
            tn = 128
    assert npad % tn == 0
    num_tiles = npad // tn

    # Transpose so batch is the (fast) lane axis; zero-pad features and batch.
    xT = jnp.zeros((dp, npad), input_dtype).at[:d, :n].set(x.T.astype(input_dtype))
    yT = jnp.zeros((dp, npad), input_dtype).at[:d, :n].set(y.T.astype(input_dtype))
    # Lane-concatenate each x tile with its matching y tile wrapper-side so the
    # kernel sees one contiguous (Dp, 2*TN) slab per grid step.
    xy = jnp.concatenate(
        [xT.reshape(dp, num_tiles, tn), yT.reshape(dp, num_tiles, tn)], axis=-1
    ).reshape(dp, num_tiles * 2 * tn)

    # Zero-padded hidden rows contribute relu(0 @ x + 0) * 0 = 0 -> exact result.
    w1p = jnp.zeros((hp, dp), input_dtype).at[:hdim, :d].set(w1.astype(input_dtype))
    b1c = jnp.zeros((hp, 1), jnp.float32).at[:hdim, 0].set(b1.astype(jnp.float32))
    w2c = jnp.zeros((hp, 1), jnp.float32).at[:hdim, 0].set(
        w2.reshape(hdim).astype(jnp.float32))
    b2c = b2.reshape(1, 1).astype(jnp.float32)

    itemsize = jnp.dtype(input_dtype).itemsize
    flops = 2 * (2 * n * d * hdim) + 4 * n * hdim
    bytes_accessed = (2 * n * d * itemsize + n * 4
                      + hdim * d * itemsize + (2 * hdim + 1) * 4)

    out = pl.pallas_call(
        mine_kernel,
        out_shape=jax.ShapeDtypeStruct((1, npad), jnp.float32),
        grid=(num_tiles,),
        in_specs=[
            pl.BlockSpec((dp, 2 * tn), lambda i: (0, i)),   # streamed [x|y] tile
            pl.BlockSpec((hp, dp), lambda i: (0, 0)),       # resident fc1 weight
            pl.BlockSpec((hp, 1), lambda i: (0, 0)),        # resident fc1 bias
            pl.BlockSpec((hp, 1), lambda i: (0, 0)),        # resident fc2 weight
            pl.BlockSpec((1, 1), lambda i: (0, 0)),         # resident fc2 bias
        ],
        out_specs=pl.BlockSpec((1, tn), lambda i: (0, i)),  # lane-dense output tile
        compiler_params=pltpu.CompilerParams(
            dimension_semantics=("parallel",),
            vmem_limit_bytes=32 * 1024 * 1024,
        ),
        cost_estimate=pl.CostEstimate(
            flops=flops, transcendentals=0, bytes_accessed=bytes_accessed),
    )(xy, w1p, b1c, w2c, b2c)

    # Undo the transpose/padding: (1, Npad) -> (N, 1).
    return out[0, :n].reshape(n, 1)


def init_params(key, input_size, hidden_size):
    """Deterministic init mimicking PyTorch nn.Linear default (U[-1/sqrt(fan_in), +]).

    Weights are kept in the PyTorch (out_features, in_features) layout.
    """
    k1, k2, k3, k4 = jax.random.split(key, 4)
    bound1 = 1.0 / jnp.sqrt(input_size)
    bound2 = 1.0 / jnp.sqrt(hidden_size)
    w1 = jax.random.uniform(k1, (hidden_size, input_size), jnp.float32, -bound1, bound1)
    b1 = jax.random.uniform(k2, (hidden_size,), jnp.float32, -bound1, bound1)
    w2 = jax.random.uniform(k3, (1, hidden_size), jnp.float32, -bound2, bound2)
    b2 = jax.random.uniform(k4, (1,), jnp.float32, -bound2, bound2)
    return w1, b1, w2, b2


def mine_reference(x, y, w1, b1, w2, b2):
    hx = jnp.maximum(x @ w1.T + b1, 0.0)
    hy = jnp.maximum(y @ w1.T + b1, 0.0)
    h = jnp.maximum(hx + hy, 0.0)
    return h @ w2.T + b2


if __name__ == "__main__":
    # Sizes from the PyTorch spec: input_size=3, hidden_size=100, batch=100.
    input_size = 3
    hidden_size = 100
    batch = 100

    key = jax.random.PRNGKey(0)
    kx, ky, kp = jax.random.split(key, 3)
    x = jax.random.normal(kx, (batch, input_size), jnp.float32)
    y = jax.random.normal(ky, (batch, input_size), jnp.float32)
    w1, b1, w2, b2 = init_params(kp, input_size, hidden_size)

    mi = jax.block_until_ready(mine_forward(x, y, w1, b1, w2, b2))
    ref = mine_reference(x, y, w1, b1, w2, b2)
    assert mi.shape == (batch, 1), mi.shape
    assert jnp.allclose(mi, ref, atol=1e-4, rtol=1e-4), float(jnp.max(jnp.abs(mi - ref)))

    # Also exercise a multi-tile grid (batch 300 pads to 3 lane-tiles of 128).
    xb = jax.random.normal(kx, (300, input_size), jnp.float32)
    yb = jax.random.normal(ky, (300, input_size), jnp.float32)
    mib = jax.block_until_ready(mine_forward(xb, yb, w1, b1, w2, b2, tn=128))
    refb = mine_reference(xb, yb, w1, b1, w2, b2)
    assert mib.shape == (300, 1), mib.shape
    assert jnp.allclose(mib, refb, atol=1e-4, rtol=1e-4), float(jnp.max(jnp.abs(mib - refb)))

    print("KERNEL_OK")
</pallas_src>

<mosaic_0001>
module attributes {stable_mosaic.version = 11 : i64} {
  func.func @mine_kernel(%arg0: i32, %arg1: memref<8x256xf32, #tpu.memory_space<vmem>>, %arg2: memref<104x8xf32, #tpu.memory_space<vmem>>, %arg3: memref<104x1xf32, #tpu.memory_space<vmem>>, %arg4: memref<104x1xf32, #tpu.memory_space<vmem>>, %arg5: memref<1x1xf32, #tpu.memory_space<vmem>>, %arg6: memref<1x128xf32, #tpu.memory_space<vmem>>) attributes {dimension_semantics = [#tpu.dimension_semantics<parallel>], iteration_bounds = array<i64: 1>, scalar_prefetch = 0 : i64, scratch_operands = 0 : i64, tpu.core_type = #tpu.core_type<tc>, window_params = [{transform_indices = @transform_0, window_bounds = array<i64: 8, 256>}, {pipeline_mode = #tpu.pipeline_mode<synchronous>, transform_indices = @transform_1, window_bounds = array<i64: 104, 8>}, {pipeline_mode = #tpu.pipeline_mode<synchronous>, transform_indices = @transform_2, window_bounds = array<i64: 104, 1>}, {pipeline_mode = #tpu.pipeline_mode<synchronous>, transform_indices = @transform_3, window_bounds = array<i64: 104, 1>}, {pipeline_mode = #tpu.pipeline_mode<synchronous>, transform_indices = @transform_4, window_bounds = array<i64: 1, 1>}, {transform_indices = @transform_5, window_bounds = array<i64: 1, 128>}]} {
    %c0 = arith.constant 0 : index
    %c0_0 = arith.constant 0 : index
    %0 = vector.load %arg2[%c0, %c0_0] : memref<104x8xf32, #tpu.memory_space<vmem>>, vector<104x8xf32>
    %c0_1 = arith.constant 0 : index
    %c0_2 = arith.constant 0 : index
    %1 = vector.load %arg1[%c0_1, %c0_2] : memref<8x256xf32, #tpu.memory_space<vmem>>, vector<8x256xf32>
    %cst = arith.constant dense<0.000000e+00> : vector<104x256xf32>
    %2 = tpu.matmul %0, %1, %cst {dimension_numbers = #tpu.dot_dimension_numbers<[1], [0], [0], [1], [0, 0, 1, 1], [], []>} : vector<104x8xf32>, vector<8x256xf32>, vector<104x256xf32> -> vector<104x256xf32>
    %c0_3 = arith.constant 0 : index
    %c0_4 = arith.constant 0 : index
    %3 = vector.load %arg3[%c0_3, %c0_4] : memref<104x1xf32, #tpu.memory_space<vmem>>, vector<104x1xf32>
    %4 = vector.broadcast %3 : vector<104x1xf32> to vector<104x256xf32>
    %5 = arith.addf %2, %4 : vector<104x256xf32>
    %cst_5 = arith.constant 0.000000e+00 : f32
    %6 = vector.broadcast %cst_5 : f32 to vector<104x256xf32>
    %7 = arith.maximumf %5, %6 : vector<104x256xf32>
    %8 = vector.extract_strided_slice %7 {offsets = [0, 0], sizes = [104, 128], strides = [1, 1]} : vector<104x256xf32> to vector<104x128xf32>
    %9 = vector.extract_strided_slice %7 {offsets = [0, 128], sizes = [104, 128], strides = [1, 1]} : vector<104x256xf32> to vector<104x128xf32>
    %10 = arith.addf %8, %9 : vector<104x128xf32>
    %c0_6 = arith.constant 0 : index
    %c0_7 = arith.constant 0 : index
    %11 = vector.load %arg4[%c0_6, %c0_7] : memref<104x1xf32, #tpu.memory_space<vmem>>, vector<104x1xf32>
    %12 = vector.broadcast %11 : vector<104x1xf32> to vector<104x128xf32>
    %13 = arith.mulf %10, %12 : vector<104x128xf32>
    %cst_8 = arith.constant dense<0.000000e+00> : vector<128xf32>
    %14 = vector.multi_reduction <add>, %13, %cst_8 [0] : vector<104x128xf32> to vector<128xf32>
    %15 = vector.shape_cast %14 : vector<128xf32> to vector<1x128xf32>
    %c0_9 = arith.constant 0 : index
    %c0_10 = arith.constant 0 : index
    %16 = vector.load %arg5[%c0_9, %c0_10] : memref<1x1xf32, #tpu.memory_space<vmem>>, vector<1x1xf32>
    %17 = vector.broadcast %16 : vector<1x1xf32> to vector<1x128xf32>
    %18 = arith.addf %15, %17 : vector<1x128xf32>
    %c0_11 = arith.constant 0 : index
    %c0_12 = arith.constant 0 : index
    %19 = vector.load %arg6[%c0_11, %c0_12] : memref<1x128xf32, #tpu.memory_space<vmem>>, vector<1x128xf32>
    tpu.vector_store %arg6[%c0_11, %c0_12], %18 {strides = array<i32>} : memref<1x128xf32, #tpu.memory_space<vmem>>, vector<1x128xf32>,
    return
  }
  func.func @transform_0(%arg0: i32) -> (i32, i32) {
    %c0_i32 = arith.constant 0 : i32
    %c0_i32_0 = arith.constant 0 : i32
    return %c0_i32, %arg0 : i32, i32
  }
  func.func @transform_1(%arg0: i32) -> (i32, i32) {
    %c0_i32 = arith.constant 0 : i32
    %c0_i32_0 = arith.constant 0 : i32
    %c0_i32_1 = arith.constant 0 : i32
    return %c0_i32, %c0_i32_0 : i32, i32
  }
  func.func @transform_2(%arg0: i32) -> (i32, i32) {
    %c0_i32 = arith.constant 0 : i32
    %c0_i32_0 = arith.constant 0 : i32
    %c0_i32_1 = arith.constant 0 : i32
    return %c0_i32, %c0_i32_0 : i32, i32
  }
  func.func @transform_3(%arg0: i32) -> (i32, i32) {
    %c0_i32 = arith.constant 0 : i32
    %c0_i32_0 = arith.constant 0 : i32
    %c0_i32_1 = arith.constant 0 : i32
    return %c0_i32, %c0_i32_0 : i32, i32
  }
  func.func @transform_4(%arg0: i32) -> (i32, i32) {
    %c0_i32 = arith.constant 0 : i32
    %c0_i32_0 = arith.constant 0 : i32
    %c0_i32_1 = arith.constant 0 : i32
    return %c0_i32, %c0_i32_0 : i32, i32
  }
  func.func @transform_5(%arg0: i32) -> (i32, i32) {
    %c0_i32 = arith.constant 0 : i32
    %c0_i32_0 = arith.constant 0 : i32
    return %c0_i32, %arg0 : i32, i32
  }
}

</mosaic_0001>

<llo_original>
// kernel: tpu_custom_call.1
$region0: #{tpu_custom_call.1}
  #allocation0 [shape = 'u32[]', space=smem, size = 0x4, offset = 0x4, fixed_abs, tag = 'smem constant byte address 0x4 - core index']
  #allocation1 [shape = 'u32[144,128]{1,0:T(1,128)}', space=vmem, size = 0x12000, scoped, tag = 'internal scratch']
  #allocation2 [shape = 'f32[1,1]{1,0:T(1,128)S(1)}', space=vmem, size = 0x200, scoped, tag = 'scoped memory for tpu_custom_call.1']
  %s0 = inlined_call_operand.vmem [shape: f32[8,256], index: 0, kind: input, shape index: {}]
  %s1 = inlined_call_operand.vmem [shape: f32[104,8], index: 1, kind: input, shape index: {}]
  %s2 = inlined_call_operand.vmem [shape: f32[104,1], index: 2, kind: input, shape index: {}]
  %s3 = inlined_call_operand.vmem [shape: f32[104,1], index: 3, kind: input, shape index: {}]
  %s4 = inlined_call_operand.<no memory space> [shape: f32[1,1], index: 4, kind: input, shape index: {}]
  %s5 = inlined_call_operand.hbm [shape: f32[1,128], index: 5, kind: output, shape index: {}]
  %s6 = sld [smem:[#allocation0]]
  $region30: #{tpu_custom_call.1} parent=0
    _
  %s8 = ssub.s32 1, %s6
  %s9 = scalar_select 0, %s8, %s6
  %v10 = vstv %s4
  %11 = vst [vmem:[#allocation2] sm:$0x1] %v10
  $region1: #{tpu_custom_call.1} parent=0
    #allocation3 [shape = 'u8[512]{0}', space=vmem, size = 0x400, scoped, tag = 'output window, operand 0, single buffered']
    #allocation4 [shape = 's32[1]{0}', space=sflag, size = 0x4, scoped, tag = 'scoped memory for tpu_custom_call.1']
    %12 = vsyncpa [#allocation4], 0
    // Predicated region
    $region2: #{tpu_custom_call.1} parent=1 // pred_check
      _
    $region3: #{tpu_custom_call.1} parent=1 // pred_check_branch
      %14 = sbr.rel (0) target = $region5
    $region4: #{tpu_custom_call.1} parent=1 // pred_region
      _
    $region5: #{tpu_custom_call.1} parent=1 // pred_fallthru
      _
    // Predicated region
    $region6: #{tpu_custom_call.1} parent=1 // pred_check
      _
    $region7: #{tpu_custom_call.1} parent=1 // pred_check_branch
      %16 = sbr.rel (0) target = $region9
    $region8: #{tpu_custom_call.1} parent=1 // pred_region
      _
    $region9: #{tpu_custom_call.1} parent=1 // pred_fallthru
      _
    // Predicated region
    $region10: #{tpu_custom_call.1} parent=1 // pred_check
      _
    $region11: #{tpu_custom_call.1} parent=1 // pred_check_branch
      %18 = sbr.rel (0) target = $region13
    $region12: #{tpu_custom_call.1} parent=1 // pred_region
      _
    $region13: #{tpu_custom_call.1} parent=1 // pred_fallthru
      _
    // Predicated region
    $region14: #{tpu_custom_call.1} parent=1 // pred_check
      _
    $region15: #{tpu_custom_call.1} parent=1 // pred_check_branch
      %20 = sbr.rel (0) target = $region17
    $region16: #{tpu_custom_call.1} parent=1 // pred_region
      _
    $region17: #{tpu_custom_call.1} parent=1 // pred_fallthru
      _
    // Predicated region
    $region18: #{tpu_custom_call.1} parent=1 // pred_check
      _
    $region19: #{tpu_custom_call.1} parent=1 // pred_check_branch
      %22 = sbr.rel (0) target = $region21
    $region20: #{tpu_custom_call.1} parent=1 // pred_region
      _
    $region21: #{tpu_custom_call.1} parent=1 // pred_fallthru
      _
    %v23 = vld [vmem:[%s1] sm:$0xff]
    %v24 = vld [vmem:[%s1 + $0x8] sm:$0xff]
    %v25 = vld [vmem:[%s1 + $0x10] sm:$0xff]
    %v26 = vld [vmem:[%s1 + $0x18] sm:$0xff]
    %v27 = vld [vmem:[%s1 + $0x20] sm:$0xff]
    %v28 = vld [vmem:[%s1 + $0x28] sm:$0xff]
    %v29 = vld [vmem:[%s1 + $0x30] sm:$0xff]
    %v30 = vld [vmem:[%s1 + $0x38] sm:$0xff]
    %v31 = vld [vmem:[%s1 + $0x40] sm:$0xff]
    %v32 = vld [vmem:[%s1 + $0x48] sm:$0xff]
    %v33 = vld [vmem:[%s1 + $0x50] sm:$0xff]
    %v34 = vld [vmem:[%s1 + $0x58] sm:$0xff]
    %v35 = vld [vmem:[%s1 + $0x60] sm:$0xff]
    %v36 = vld [vmem:[%s0] sm:$0xff]
    %v37 = vld [vmem:[%s0 + $0x8] sm:$0xff]
    %v38 = vld [vmem:[%s2] sm:$0xff]
    %v39 = vld [vmem:[%s2 + $0x8] sm:$0xff]
    %v40 = vld [vmem:[%s2 + $0x10] sm:$0xff]
    %v41 = vld [vmem:[%s2 + $0x18] sm:$0xff]
    %v42 = vld [vmem:[%s2 + $0x20] sm:$0xff]
    %v43 = vld [vmem:[%s2 + $0x28] sm:$0xff]
    %v44 = vld [vmem:[%s2 + $0x30] sm:$0xff]
    %v45 = vld [vmem:[%s2 + $0x38] sm:$0xff]
    %v46 = vld [vmem:[%s2 + $0x40] sm:$0xff]
    %v47 = vld [vmem:[%s2 + $0x48] sm:$0xff]
    %v48 = vld [vmem:[%s2 + $0x50] sm:$0xff]
    %v49 = vld [vmem:[%s2 + $0x58] sm:$0xff]
    %v50 = vld [vmem:[%s2 + $0x60] sm:$0xff]
    %52 = vset.pattern.permute.xlu0 0
    %53 = vperm.xlu0 %52, %v38
    %v54 = vpop.permute.xlu0 %53
    %57 = vset.pattern.permute.xlu0 0
    %58 = vperm.xlu0 %57, %v39
    %v59 = vpop.permute.xlu0 %58
    %62 = vset.pattern.permute.xlu0 0
    %63 = vperm.xlu0 %62, %v40
    %v64 = vpop.permute.xlu0 %63
    %67 = vset.pattern.permute.xlu0 0
    %68 = vperm.xlu0 %67, %v41
    %v69 = vpop.permute.xlu0 %68
    %72 = vset.pattern.permute.xlu0 0
    %73 = vperm.xlu0 %72, %v42
    %v74 = vpop.permute.xlu0 %73
    %77 = vset.pattern.permute.xlu0 0
    %78 = vperm.xlu0 %77, %v43
    %v79 = vpop.permute.xlu0 %78
    %82 = vset.pattern.permute.xlu0 0
    %83 = vperm.xlu0 %82, %v44
    %v84 = vpop.permute.xlu0 %83
    %87 = vset.pattern.permute.xlu0 0
    %88 = vperm.xlu0 %87, %v45
    %v89 = vpop.permute.xlu0 %88
    %92 = vset.pattern.permute.xlu0 0
    %93 = vperm.xlu0 %92, %v46
    %v94 = vpop.permute.xlu0 %93
    %97 = vset.pattern.permute.xlu0 0
    %98 = vperm.xlu0 %97, %v47
    %v99 = vpop.permute.xlu0 %98
    %102 = vset.pattern.permute.xlu0 0
    %103 = vperm.xlu0 %102, %v48
    %v104 = vpop.permute.xlu0 %103
    %107 = vset.pattern.permute.xlu0 0
    %108 = vperm.xlu0 %107, %v49
    %v109 = vpop.permute.xlu0 %108
    %112 = vset.pattern.permute.xlu0 0
    %113 = vperm.xlu0 %112, %v50
    %v114 = vpop.permute.xlu0 %113
    %vm116 = vcmask 64512
    %v118 = vsel %vm116, %v23, 0
    %v121 = vsel %vm116, %v24, 0
    %v124 = vsel %vm116, %v25, 0
    %v127 = vsel %vm116, %v26, 0
    %v130 = vsel %vm116, %v27, 0
    %v133 = vsel %vm116, %v28, 0
    %v136 = vsel %vm116, %v29, 0
    %v139 = vsel %vm116, %v30, 0
    %v142 = vsel %vm116, %v31, 0
    %v145 = vsel %vm116, %v32, 0
    %v148 = vsel %vm116, %v33, 0
    %v151 = vsel %vm116, %v34, 0
    %v154 = vsel %vm116, %v35, 0
    %156 = vmatprep.subr.mxu0 0.0
    %157 = vmatpush1.msra.mxu0 0.0
    %158 = vmatprep.subr.mxu0 0.0
    %159 = vmatpush1.msra.mxu0 0.0
    %160 = vmatprep.subr.mxu0 0.0
    %161 = vmatpush1.msra.mxu0 0.0
    %162 = vmatprep.subr.mxu0 0.0
    %163 = vmatpush1.msra.mxu0 0.0
    %164 = vmatprep.subr.mxu0 0.0
    %165 = vmatpush1.msra.mxu0 0.0
    %166 = vmatprep.subr.mxu0 0.0
    %167 = vmatpush1.msra.mxu0 0.0
    %168 = vmatprep.subr.mxu0 0.0
    %169 = vmatpush1.msra.mxu0 0.0
    %170 = vmatprep.subr.mxu0 0.0
    %171 = vmatpush1.msra.mxu0 0.0
    %172 = vmatprep.subr.mxu0 0.0
    %173 = vmatpush1.msra.mxu0 0.0
    %174 = vmatprep.subr.mxu0 0.0
    %175 = vmatpush1.msra.mxu0 0.0
    %176 = vmatprep.subr.mxu0 0.0
    %177 = vmatpush1.msra.mxu0 0.0
    %178 = vmatprep.subr.mxu0 0.0
    %179 = vmatpush1.msra.mxu0 0.0
    %180 = vmatprep.subr.mxu0 0.0
    %181 = vmatpush1.msra.mxu0 0.0
    %182 = vmatprep.subr.mxu0 0.0
    %183 = vmatpush1.msra.mxu0 0.0
    %184 = vmatprep.subr.mxu0 0.0
    %185 = vmatpush1.msra.mxu0 0.0
    %186 = vmatprep.subr.mxu0 %v37
    %187 = vmatpush1.msra.mxu0 %v36
    %188 = vmatprep.subr.mxu0 0.0
    %189 = vmatpush2.msra.mxu0 0.0
    %190 = vmatprep.subr.mxu0 0.0
    %191 = vmatpush2.msra.mxu0 0.0
    %192 = vmatprep.subr.mxu0 0.0
    %193 = vmatpush2.msra.mxu0 0.0
    %194 = vmatprep.subr.mxu0 0.0
    %195 = vmatpush2.msra.mxu0 0.0
    %196 = vmatprep.subr.mxu0 0.0
    %197 = vmatpush2.msra.mxu0 0.0
    %198 = vmatprep.subr.mxu0 0.0
    %199 = vmatpush2.msra.mxu0 0.0
    %200 = vmatprep.subr.mxu0 0.0
    %201 = vmatpush2.msra.mxu0 0.0
    %202 = vmatprep.subr.mxu0 0.0
    %203 = vmatpush2.msra.mxu0 0.0
    %204 = vmatprep.subr.mxu0 0.0
    %205 = vmatpush2.msra.mxu0 0.0
    %206 = vmatprep.subr.mxu0 0.0
    %207 = vmatpush2.msra.mxu0 0.0
    %208 = vmatprep.subr.mxu0 0.0
    %209 = vmatpush2.msra.mxu0 0.0
    %210 = vmatprep.subr.mxu0 0.0
    %211 = vmatpush2.msra.mxu0 0.0
    %212 = vmatprep.subr.mxu0 0.0
    %213 = vmatpush2.msra.mxu0 0.0
    %214 = vmatprep.subr.mxu0 0.0
    %215 = vmatpush2.msra.mxu0 0.0
    %216 = vmatprep.subr.mxu0 0.0
    %217 = vmatpush2.msra.mxu0 0.0
    %218 = vmatprep.subr.mxu0 0.0
    %219 = vmatpush2.msra.mxu0 0.0
    %220 = vmatprep.mubr.f32.mxu0 0.0
    %221 = vmatmul.mubr.f32.gmra.mxu0 %v118
    %v222 = vpop.f32.mrf.mxu0
    %v223 = vadd.f32 %v54, %v222
    %v224 = vpop.f32.mrf.mxu0
    %v225 = vadd.f32 %v54, %v224
    %226 = vmatprep.mubr.f32.mxu0 0.0
    %227 = vmatmul.mubr.f32.gmra.mxu0 %v121
    %v228 = vpop.f32.mrf.mxu0
    %v229 = vadd.f32 %v59, %v228
    %v230 = vpop.f32.mrf.mxu0
    %v231 = vadd.f32 %v59, %v230
    %232 = vmatprep.mubr.f32.mxu0 0.0
    %233 = vmatmul.mubr.f32.gmra.mxu0 %v124
    %v234 = vpop.f32.mrf.mxu0
    %v235 = vadd.f32 %v64, %v234
    %v236 = vpop.f32.mrf.mxu0
    %v237 = vadd.f32 %v64, %v236
    %238 = vmatprep.mubr.f32.mxu0 0.0
    %239 = vmatmul.mubr.f32.gmra.mxu0 %v127
    %v240 = vpop.f32.mrf.mxu0
    %v241 = vadd.f32 %v69, %v240
    %v242 = vpop.f32.mrf.mxu0
    %v243 = vadd.f32 %v69, %v242
    %244 = vmatprep.mubr.f32.mxu0 0.0
    %245 = vmatmul.mubr.f32.gmra.mxu0 %v130
    %v246 = vpop.f32.mrf.mxu0
    %v247 = vadd.f32 %v74, %v246
    %v248 = vpop.f32.mrf.mxu0
    %v249 = vadd.f32 %v74, %v248
    %250 = vmatprep.mubr.f32.mxu0 0.0
    %251 = vmatmul.mubr.f32.gmra.mxu0 %v133
    %v252 = vpop.f32.mrf.mxu0
    %v253 = vadd.f32 %v79, %v252
    %v254 = vpop.f32.mrf.mxu0
    %v255 = vadd.f32 %v79, %v254
    %256 = vmatprep.mubr.f32.mxu0 0.0
    %257 = vmatmul.mubr.f32.gmra.mxu0 %v136
    %v258 = vpop.f32.mrf.mxu0
    %v259 = vadd.f32 %v84, %v258
    %v260 = vpop.f32.mrf.mxu0
    %v261 = vadd.f32 %v84, %v260
    %262 = vmatprep.mubr.f32.mxu0 0.0
    %263 = vmatmul.mubr.f32.gmra.mxu0 %v139
    %v264 = vpop.f32.mrf.mxu0
    %v265 = vadd.f32 %v89, %v264
    %v266 = vpop.f32.mrf.mxu0
    %v267 = vadd.f32 %v89, %v266
    %268 = vmatprep.mubr.f32.mxu0 0.0
    %269 = vmatmul.mubr.f32.gmra.mxu0 %v142
    %v270 = vpop.f32.mrf.mxu0
    %v271 = vadd.f32 %v94, %v270
    %v272 = vpop.f32.mrf.mxu0
    %v273 = vadd.f32 %v94, %v272
    %274 = vmatprep.mubr.f32.mxu0 0.0
    %275 = vmatmul.mubr.f32.gmra.mxu0 %v145
    %v276 = vpop.f32.mrf.mxu0
    %v277 = vadd.f32 %v99, %v276
    %v278 = vpop.f32.mrf.mxu0
    %v279 = vadd.f32 %v99, %v278
    %280 = vmatprep.mubr.f32.mxu0 0.0
    %281 = vmatmul.mubr.f32.gmra.mxu0 %v148
    %v282 = vpop.f32.mrf.mxu0
    %v283 = vadd.f32 %v104, %v282
    %v284 = vpop.f32.mrf.mxu0
    %v285 = vadd.f32 %v104, %v284
    %286 = vmatprep.mubr.f32.mxu0 0.0
    %287 = vmatmul.mubr.f32.gmra.mxu0 %v151
    %v288 = vpop.f32.mrf.mxu0
    %v289 = vadd.f32 %v109, %v288
    %v290 = vpop.f32.mrf.mxu0
    %v291 = vadd.f32 %v109, %v290
    %292 = vmatprep.mubr.f32.mxu0 0.0
    %293 = vmatmul.mubr.f32.gmra.mxu0 %v154
    %v294 = vpop.f32.mrf.mxu0
    %v295 = vadd.f32 %v114, %v294
    %v296 = vpop.f32.mrf.mxu0
    %v297 = vadd.f32 %v114, %v296
    %298 = vdwg.mxu0
    %v299 = vmax.f32 %v223, 0.0
    %v300 = vmax.f32 %v225, 0.0
    %v301 = vmax.f32 %v229, 0.0
    %v302 = vmax.f32 %v231, 0.0
    %v303 = vmax.f32 %v235, 0.0
    %v304 = vmax.f32 %v237, 0.0
    %v305 = vmax.f32 %v241, 0.0
    %v306 = vmax.f32 %v243, 0.0
    %v307 = vmax.f32 %v247, 0.0
    %v308 = vmax.f32 %v249, 0.0
    %v309 = vmax.f32 %v253, 0.0
    %v310 = vmax.f32 %v255, 0.0
    %v311 = vmax.f32 %v259, 0.0
    %v312 = vmax.f32 %v261, 0.0
    %v313 = vmax.f32 %v265, 0.0
    %v314 = vmax.f32 %v267, 0.0
    %v315 = vmax.f32 %v271, 0.0
    %v316 = vmax.f32 %v273, 0.0
    %v317 = vmax.f32 %v277, 0.0
    %v318 = vmax.f32 %v279, 0.0
    %v319 = vmax.f32 %v283, 0.0
    %v320 = vmax.f32 %v285, 0.0
    %v321 = vmax.f32 %v289, 0.0
    %v322 = vmax.f32 %v291, 0.0
    %v323 = vmax.f32 %v295, 0.0
    %v324 = vmax.f32 %v297, 0.0
    %v325 = vadd.f32 %v299, %v300
    %v326 = vadd.f32 %v301, %v302
    %v327 = vadd.f32 %v303, %v304
    %v328 = vadd.f32 %v305, %v306
    %v329 = vadd.f32 %v307, %v308
    %v330 = vadd.f32 %v309, %v310
    %v331 = vadd.f32 %v311, %v312
    %v332 = vadd.f32 %v313, %v314
    %v333 = vadd.f32 %v315, %v316
    %v334 = vadd.f32 %v317, %v318
    %v335 = vadd.f32 %v319, %v320
    %v336 = vadd.f32 %v321, %v322
    %v337 = vadd.f32 %v323, %v324
    %v338 = vld [vmem:[%s3] sm:$0xff]
    %v339 = vld [vmem:[%s3 + $0x8] sm:$0xff]
    %v340 = vld [vmem:[%s3 + $0x10] sm:$0xff]
    %v341 = vld [vmem:[%s3 + $0x18] sm:$0xff]
    %v342 = vld [vmem:[%s3 + $0x20] sm:$0xff]
    %v343 = vld [vmem:[%s3 + $0x28] sm:$0xff]
    %v344 = vld [vmem:[%s3 + $0x30] sm:$0xff]
    %v345 = vld [vmem:[%s3 + $0x38] sm:$0xff]
    %v346 = vld [vmem:[%s3 + $0x40] sm:$0xff]
    %v347 = vld [vmem:[%s3 + $0x48] sm:$0xff]
    %v348 = vld [vmem:[%s3 + $0x50] sm:$0xff]
    %v349 = vld [vmem:[%s3 + $0x58] sm:$0xff]
    %v350 = vld [vmem:[%s3 + $0x60] sm:$0xff]
    %352 = vset.pattern.permute.xlu0 0
    %353 = vperm.xlu0 %352, %v338
    %v354 = vpop.permute.xlu0 %353
    %357 = vset.pattern.permute.xlu0 0
    %358 = vperm.xlu0 %357, %v339
    %v359 = vpop.permute.xlu0 %358
    %362 = vset.pattern.permute.xlu0 0
    %363 = vperm.xlu0 %362, %v340
    %v364 = vpop.permute.xlu0 %363
    %367 = vset.pattern.permute.xlu0 0
    %368 = vperm.xlu0 %367, %v341
    %v369 = vpop.permute.xlu0 %368
    %372 = vset.pattern.permute.xlu0 0
    %373 = vperm.xlu0 %372, %v342
    %v374 = vpop.permute.xlu0 %373
    %377 = vset.pattern.permute.xlu0 0
    %378 = vperm.xlu0 %377, %v343
    %v379 = vpop.permute.xlu0 %378
    %382 = vset.pattern.permute.xlu0 0
    %383 = vperm.xlu0 %382, %v344
    %v384 = vpop.permute.xlu0 %383
    %387 = vset.pattern.permute.xlu0 0
    %388 = vperm.xlu0 %387, %v345
    %v389 = vpop.permute.xlu0 %388
    %392 = vset.pattern.permute.xlu0 0
    %393 = vperm.xlu0 %392, %v346
    %v394 = vpop.permute.xlu0 %393
    %397 = vset.pattern.permute.xlu0 0
    %398 = vperm.xlu0 %397, %v347
    %v399 = vpop.permute.xlu0 %398
    %402 = vset.pattern.permute.xlu0 0
    %403 = vperm.xlu0 %402, %v348
    %v404 = vpop.permute.xlu0 %403
    %407 = vset.pattern.permute.xlu0 0
    %408 = vperm.xlu0 %407, %v349
    %v409 = vpop.permute.xlu0 %408
    %412 = vset.pattern.permute.xlu0 0
    %413 = vperm.xlu0 %412, %v350
    %v414 = vpop.permute.xlu0 %413
    %v416 = vmul.f32 %v325, %v354
    %v417 = vmul.f32 %v326, %v359
    %v418 = vmul.f32 %v327, %v364
    %v419 = vmul.f32 %v328, %v369
    %v420 = vmul.f32 %v329, %v374
    %v421 = vmul.f32 %v330, %v379
    %v422 = vmul.f32 %v331, %v384
    %v423 = vmul.f32 %v332, %v389
    %v424 = vmul.f32 %v333, %v394
    %v425 = vmul.f32 %v334, %v399
    %v426 = vmul.f32 %v335, %v404
    %v427 = vmul.f32 %v336, %v409
    %v428 = vmul.f32 %v337, %v414
    %v429 = vadd.f32 %v416, %v417
    %v430 = vadd.f32 %v429, %v418
    %v431 = vadd.f32 %v430, %v419
    %v432 = vadd.f32 %v431, %v420
    %v433 = vadd.f32 %v432, %v421
    %v434 = vadd.f32 %v433, %v422
    %v435 = vadd.f32 %v434, %v423
    %v436 = vadd.f32 %v435, %v424
    %v437 = vadd.f32 %v436, %v425
    %v438 = vadd.f32 %v437, %v426
    %v439 = vadd.f32 %v438, %v427
    %v440 = vadd.f32 %v439, %v428
    %v441 = vrot.slane %v440, 4
    %v442 = vadd.f32 %v440, %v441
    %v443 = vrot.slane %v442, 2
    %v444 = vadd.f32 %v442, %v443
    %v445 = vrot.slane %v444, 1
    %v446 = vadd.f32 %v444, %v445
    %v447 = vld [vmem:[#allocation2] sm:$0x1]
    %449 = vset.pattern.permute.xlu0 0
    %450 = vperm.xlu0 %449, %v447
    %v451 = vpop.permute.xlu0 %450
    %v453 = vlaneseq
    %v454 = vshrl.u32 %v453, 7
    %v455 = vsub.s32 0, %v454
    %v456 = vrot.slane %v451, %v455
    %v457 = vadd.f32 %v446, %v456
    %458 = vst [vmem:[#allocation3] sm:$0x1] %v457
    // Predicated region
    $region22: #{tpu_custom_call.1} parent=1 // pred_check
      _
    $region23: #{tpu_custom_call.1} parent=1 // pred_check_branch
      %460 = sbr.rel (0) target = $region25
    $region24: #{tpu_custom_call.1} parent=1 // pred_region
      %s462 = ssub.s32 16, 16
      %463 = vsyncadd [#allocation4], %s462
      %s465 = sshll.u32 [#allocation3], 4
      %s466 = int_to_ptr.vmem [resolvable:$true] %s465
      %468 = dma.vmem_to_hbm [thread:$0]  %s466, 16, %s5, [#allocation4]
    $region25: #{tpu_custom_call.1} parent=1 // pred_fallthru
      _
    // Predicated region
    $region26: #{tpu_custom_call.1} parent=1 // pred_check
      _
    $region27: #{tpu_custom_call.1} parent=1 // pred_check_branch
      %470 = sbr.rel (0) target = $region29
    $region28: #{tpu_custom_call.1} parent=1 // pred_region
      %471 = dma.done [#allocation4], 16
    $region29: #{tpu_custom_call.1} parent=1 // pred_fallthru
      _
    %472 = vsyncpa [#allocation4], 1

</llo_original>
